<compile_context>
chip_gen: v5e
topology: v5e:2x2
jax: 0.10.0
libtpu: 0.0.40
codegen_flags: <defaults>
</compile_context>

<pallas_src>
import math

import jax
import jax.numpy as jnp
from jax.experimental import pallas as pl
from jax.experimental.pallas import tpu as pltpu


def gre_kernel(pos_ref, mu_ref, c1_ref, c2_ref, emb_ref, x_ref, out_ref, pe_ref):
    # pos_ref: [TS, K]   mu/c1/c2: [1, K]   emb_ref: [K, D]
    # x_ref / out_ref: [TS, D]  (batch dim squeezed)
    # pe_ref:  [TS, D] f32 scratch holding the cached positional encoding.
    b = pl.program_id(1)

    @pl.when(b == 0)
    def _():
        # pos_enc is identical for every batch element: compute it once per
        # S-tile and cache it across the (inner, "arbitrary") batch axis.
        a = pos_ref[...] - mu_ref[...]                          # [TS, K]
        log_p = c1_ref[...] * (a * a) + c2_ref[...]             # [TS, K]
        m = jnp.max(log_p, axis=-1, keepdims=True)
        e = jnp.exp(log_p - m)
        denom = jnp.sum(e, axis=-1, keepdims=True)
        M = e * pl.reciprocal(denom, approx=True)               # softmax over K
        pe_ref[...] = jnp.dot(M, emb_ref[...],
                              preferred_element_type=jnp.float32)   # [TS, D]

    # Steady state: one VPU add per element (add in f32, store in x's dtype).
    out_ref[...] = (x_ref[...].astype(jnp.float32) + pe_ref[...]).astype(out_ref.dtype)


def _pick_s_tile(S, D, K, itemsize, budget_bytes=20 * 1024 * 1024):
    """Largest S-tile (multiple of 8, dividing S) whose VMEM footprint fits."""
    # Per S-row in VMEM: double-buffered x-in + out (4*D*itemsize), the f32
    # positions row + pos_enc scratch row.
    per_row = 4 * D * itemsize + 2 * K * 4 + D * 4
    max_rows = max(8, budget_bytes // max(per_row, 1))
    if S <= max_rows:
        return S
    ts = int(max_rows // 8) * 8
    while ts >= 8:
        if S % ts == 0:
            return ts
        ts -= 8
    return S  # no clean divisor: fall back to one (S, D) block


def gre_forward(x, positions, mu, sigma, embedding):
    B, S, D = x.shape
    K = embedding.shape[0]

    # Loop-invariant sigma constants, precomputed once in the wrapper.
    sigma_f = sigma.astype(jnp.float32).reshape(1, K)
    c1 = -1.0 / (2.0 * sigma_f)                     # [1, K]
    c2 = -jnp.log(sigma_f) / 2.0                    # [1, K]
    mu_f = mu.astype(jnp.float32).reshape(1, K)
    positions = positions.astype(jnp.float32)       # [S, K]
    embedding = embedding.astype(jnp.float32)       # [K, D]

    ts = _pick_s_tile(S, D, K, x.dtype.itemsize)
    grid = (S // ts, B)   # batch innermost so the pos_enc scratch is reused over B

    # TODO(synk): for D < 128 a lane-dense output layout (fold S*D onto 128
    # lanes) would avoid masked partial stores; real model D (multiple of 128)
    # is already lane-dense, so the plain layout is kept here.

    return pl.pallas_call(
        gre_kernel,
        out_shape=jax.ShapeDtypeStruct((B, S, D), x.dtype),
        grid_spec=pltpu.PrefetchScalarGridSpec(
            num_scalar_prefetch=0,
            grid=grid,
            in_specs=[
                pl.BlockSpec((ts, K), lambda s, b: (s, 0)),           # positions
                pl.BlockSpec((1, K), lambda s, b: (0, 0)),            # mu
                pl.BlockSpec((1, K), lambda s, b: (0, 0)),            # c1
                pl.BlockSpec((1, K), lambda s, b: (0, 0)),            # c2
                pl.BlockSpec((K, D), lambda s, b: (0, 0)),            # embedding
                pl.BlockSpec((None, ts, D), lambda s, b: (b, s, 0)),  # x (batch squeezed)
            ],
            out_specs=pl.BlockSpec((None, ts, D), lambda s, b: (b, s, 0)),
            scratch_shapes=[pltpu.VMEM((ts, D), jnp.float32)],        # cached pos_enc
        ),
        compiler_params=pltpu.CompilerParams(
            dimension_semantics=("parallel", "arbitrary"),
            vmem_limit_bytes=48 * 1024 * 1024,
        ),
    )(positions, mu_f, c1, c2, embedding, x)


def make_gre_params(d_model, total_size, K=10, seed=0):
    key = jax.random.PRNGKey(seed)
    # xavier_uniform_ on [K, d_model]: bound = sqrt(6 / (fan_in + fan_out))
    bound = math.sqrt(6.0 / (K + d_model))
    embedding = jax.random.uniform(
        key, (K, d_model), dtype=jnp.float32, minval=-bound, maxval=bound)
    positions = jnp.tile(
        jnp.arange(total_size, dtype=jnp.float32)[:, None], (1, K))  # [S, K]
    interval = total_size / K
    mu = (jnp.arange(K, dtype=jnp.float32) * interval)[None, :]      # [1, K]
    sigma = jnp.ones((1, K), dtype=jnp.float32) * 50.0               # [1, K]
    return positions, mu, sigma, embedding


def gre_reference(x, positions, mu, sigma, embedding):
    a = positions - mu
    log_p = -(a * a) / (2.0 * sigma) - jnp.log(sigma) / 2.0
    M = jax.nn.softmax(log_p, axis=1)
    pos_enc = M @ embedding
    return x + pos_enc[None]


if __name__ == "__main__":
    B, d_model, total_size, K = 2, 32, 16, 10

    positions, mu, sigma, embedding = make_gre_params(d_model, total_size, K)

    xkey = jax.random.PRNGKey(0)
    x = jax.random.normal(xkey, (B, total_size, d_model), dtype=jnp.float32)

    out = gre_forward(x, positions, mu, sigma, embedding)
    out = jax.block_until_ready(out)

    ref = gre_reference(x, positions, mu, sigma, embedding)
    assert out.shape == (B, total_size, d_model)
    # Slightly relaxed tolerance: softmax denominator uses the EUP approximate
    # reciprocal (rel. err ~1e-4).
    assert jnp.allclose(out, ref, atol=2e-3, rtol=2e-3), float(
        jnp.max(jnp.abs(out - ref)))

    print("KERNEL_OK")
</pallas_src>

<mosaic_0001>
module attributes {stable_mosaic.version = 11 : i64} {
  func.func @gre_kernel(%arg0: i32, %arg1: i32, %arg2: memref<16x10xf32, #tpu.memory_space<vmem>>, %arg3: memref<1x10xf32, #tpu.memory_space<vmem>>, %arg4: memref<1x10xf32, #tpu.memory_space<vmem>>, %arg5: memref<1x10xf32, #tpu.memory_space<vmem>>, %arg6: memref<10x32xf32, #tpu.memory_space<vmem>>, %arg7: memref<1x16x32xf32, #tpu.memory_space<vmem>>, %arg8: memref<1x16x32xf32, #tpu.memory_space<vmem>>, %arg9: memref<16x32xf32, #tpu.memory_space<vmem>>) attributes {dimension_semantics = [#tpu.dimension_semantics<parallel>, #tpu.dimension_semantics<arbitrary>], iteration_bounds = array<i64: 1, 2>, scalar_prefetch = 0 : i64, scratch_operands = 1 : i64, tpu.core_type = #tpu.core_type<tc>, window_params = [{transform_indices = @transform_0, window_bounds = array<i64: 16, 10>}, {pipeline_mode = #tpu.pipeline_mode<synchronous>, transform_indices = @transform_1, window_bounds = array<i64: 1, 10>}, {pipeline_mode = #tpu.pipeline_mode<synchronous>, transform_indices = @transform_2, window_bounds = array<i64: 1, 10>}, {pipeline_mode = #tpu.pipeline_mode<synchronous>, transform_indices = @transform_3, window_bounds = array<i64: 1, 10>}, {pipeline_mode = #tpu.pipeline_mode<synchronous>, transform_indices = @transform_4, window_bounds = array<i64: 10, 32>}, {transform_indices = @transform_5, window_bounds = array<i64: 1, 16, 32>}, {transform_indices = @transform_6, window_bounds = array<i64: 1, 16, 32>}]} {
    %c0_i32 = arith.constant 0 : i32
    %0 = arith.cmpi eq, %arg1, %c0_i32 : i32
    %1 = arith.extui %0 : i1 to i32
    %c0_i32_0 = arith.constant 0 : i32
    %2 = arith.cmpi ne, %1, %c0_i32_0 : i32
    scf.if %2 {
      %c0_8 = arith.constant 0 : index
      %c0_9 = arith.constant 0 : index
      %10 = vector.load %arg2[%c0_8, %c0_9] : memref<16x10xf32, #tpu.memory_space<vmem>>, vector<16x10xf32>
      %c0_10 = arith.constant 0 : index
      %c0_11 = arith.constant 0 : index
      %11 = vector.load %arg3[%c0_10, %c0_11] : memref<1x10xf32, #tpu.memory_space<vmem>>, vector<1x10xf32>
      %12 = vector.broadcast %11 : vector<1x10xf32> to vector<16x10xf32>
      %13 = arith.subf %10, %12 : vector<16x10xf32>
      %c0_12 = arith.constant 0 : index
      %c0_13 = arith.constant 0 : index
      %14 = vector.load %arg4[%c0_12, %c0_13] : memref<1x10xf32, #tpu.memory_space<vmem>>, vector<1x10xf32>
      %15 = arith.mulf %13, %13 : vector<16x10xf32>
      %16 = vector.broadcast %14 : vector<1x10xf32> to vector<16x10xf32>
      %17 = arith.mulf %16, %15 : vector<16x10xf32>
      %c0_14 = arith.constant 0 : index
      %c0_15 = arith.constant 0 : index
      %18 = vector.load %arg5[%c0_14, %c0_15] : memref<1x10xf32, #tpu.memory_space<vmem>>, vector<1x10xf32>
      %19 = vector.broadcast %18 : vector<1x10xf32> to vector<16x10xf32>
      %20 = arith.addf %17, %19 : vector<16x10xf32>
      %cst = arith.constant dense<0xFF800000> : vector<16xf32>
      %21 = vector.multi_reduction <maximumf>, %20, %cst [1] : vector<16x10xf32> to vector<16xf32>
      %22 = vector.shape_cast %21 : vector<16xf32> to vector<16x1xf32>
      %23 = vector.broadcast %22 : vector<16x1xf32> to vector<16x10xf32>
      %24 = arith.subf %20, %23 : vector<16x10xf32>
      %25 = math.exp %24 : vector<16x10xf32>
      %cst_16 = arith.constant dense<0.000000e+00> : vector<16xf32>
      %26 = vector.multi_reduction <add>, %25, %cst_16 [1] : vector<16x10xf32> to vector<16xf32>
      %27 = vector.shape_cast %26 : vector<16xf32> to vector<16x1xf32>
      %28 = tpu.reciprocal %27 {approx = true} : vector<16x1xf32> -> vector<16x1xf32>
      %29 = vector.broadcast %28 : vector<16x1xf32> to vector<16x10xf32>
      %30 = arith.mulf %25, %29 : vector<16x10xf32>
      %c0_17 = arith.constant 0 : index
      %c0_18 = arith.constant 0 : index
      %31 = vector.load %arg6[%c0_17, %c0_18] : memref<10x32xf32, #tpu.memory_space<vmem>>, vector<10x32xf32>
      %cst_19 = arith.constant dense<0.000000e+00> : vector<16x32xf32>
      %32 = tpu.matmul %30, %31, %cst_19 {dimension_numbers = #tpu.dot_dimension_numbers<[1], [0], [0], [1], [0, 0, 1, 1], [], []>} : vector<16x10xf32>, vector<10x32xf32>, vector<16x32xf32> -> vector<16x32xf32>
      %c0_20 = arith.constant 0 : index
      %c0_21 = arith.constant 0 : index
      %33 = vector.load %arg9[%c0_20, %c0_21] : memref<16x32xf32, #tpu.memory_space<vmem>>, vector<16x32xf32>
      tpu.vector_store %arg9[%c0_20, %c0_21], %32 {strides = array<i32>} : memref<16x32xf32, #tpu.memory_space<vmem>>, vector<16x32xf32>,
    } else {
    }
    %c0 = arith.constant 0 : index
    %c0_1 = arith.constant 0 : index
    %c0_2 = arith.constant 0 : index
    %3 = vector.load %arg7[%c0, %c0_1, %c0_2] : memref<1x16x32xf32, #tpu.memory_space<vmem>>, vector<1x16x32xf32>
    %4 = vector.shape_cast %3 : vector<1x16x32xf32> to vector<16x32xf32>
    %c0_3 = arith.constant 0 : index
    %c0_4 = arith.constant 0 : index
    %5 = vector.load %arg9[%c0_3, %c0_4] : memref<16x32xf32, #tpu.memory_space<vmem>>, vector<16x32xf32>
    %6 = arith.addf %4, %5 : vector<16x32xf32>
    %c0_5 = arith.constant 0 : index
    %c0_6 = arith.constant 0 : index
    %c0_7 = arith.constant 0 : index
    %7 = vector.load %arg8[%c0_5, %c0_6, %c0_7] : memref<1x16x32xf32, #tpu.memory_space<vmem>>, vector<1x16x32xf32>
    %8 = vector.shape_cast %7 : vector<1x16x32xf32> to vector<16x32xf32>
    %9 = vector.shape_cast %6 : vector<16x32xf32> to vector<1x16x32xf32>
    tpu.vector_store %arg8[%c0_5, %c0_6, %c0_7], %9 {strides = array<i32>} : memref<1x16x32xf32, #tpu.memory_space<vmem>>, vector<1x16x32xf32>,
    return
  }
  func.func @transform_0(%arg0: i32, %arg1: i32) -> (i32, i32) {
    %c0_i32 = arith.constant 0 : i32
    %c0_i32_0 = arith.constant 0 : i32
    return %arg0, %c0_i32 : i32, i32
  }
  func.func @transform_1(%arg0: i32, %arg1: i32) -> (i32, i32) {
    %c0_i32 = arith.constant 0 : i32
    %c0_i32_0 = arith.constant 0 : i32
    %c0_i32_1 = arith.constant 0 : i32
    return %c0_i32, %c0_i32_0 : i32, i32
  }
  func.func @transform_2(%arg0: i32, %arg1: i32) -> (i32, i32) {
    %c0_i32 = arith.constant 0 : i32
    %c0_i32_0 = arith.constant 0 : i32
    %c0_i32_1 = arith.constant 0 : i32
    return %c0_i32, %c0_i32_0 : i32, i32
  }
  func.func @transform_3(%arg0: i32, %arg1: i32) -> (i32, i32) {
    %c0_i32 = arith.constant 0 : i32
    %c0_i32_0 = arith.constant 0 : i32
    %c0_i32_1 = arith.constant 0 : i32
    return %c0_i32, %c0_i32_0 : i32, i32
  }
  func.func @transform_4(%arg0: i32, %arg1: i32) -> (i32, i32) {
    %c0_i32 = arith.constant 0 : i32
    %c0_i32_0 = arith.constant 0 : i32
    %c0_i32_1 = arith.constant 0 : i32
    return %c0_i32, %c0_i32_0 : i32, i32
  }
  func.func @transform_5(%arg0: i32, %arg1: i32) -> (i32, i32, i32) {
    %c0_i32 = arith.constant 0 : i32
    %c0_i32_0 = arith.constant 0 : i32
    return %arg1, %arg0, %c0_i32 : i32, i32, i32
  }
  func.func @transform_6(%arg0: i32, %arg1: i32) -> (i32, i32, i32) {
    %c0_i32 = arith.constant 0 : i32
    %c0_i32_0 = arith.constant 0 : i32
    return %arg1, %arg0, %c0_i32 : i32, i32, i32
  }
}

</mosaic_0001>

<llo_original>
// kernel: tpu_custom_call.1
$region0: #{tpu_custom_call.1}
  #allocation0 [shape = 'u32[]', space=smem, size = 0x4, offset = 0x4, fixed_abs, tag = 'smem constant byte address 0x4 - core index']
  #allocation1 [shape = 'u32[72,128]{1,0:T(1,128)}', space=vmem, size = 0x9000, scoped, tag = 'internal scratch']
  #allocation2 [shape = 'f32[16,32]{1,0:T(8,128)}', space=vmem, size = 0x2000, scoped, tag = 'scratch operand']
  %s0 = inlined_call_operand.hbm [shape: f32[16,10], index: 0, kind: input, shape index: {}]
  %s1 = inlined_call_operand.hbm [shape: f32[1,10], index: 1, kind: input, shape index: {}]
  %s2 = inlined_call_operand.vmem [shape: f32[1,10], index: 2, kind: input, shape index: {}]
  %s3 = inlined_call_operand.vmem [shape: f32[1,10], index: 3, kind: input, shape index: {}]
  %s4 = inlined_call_operand.hbm [shape: f32[10,32], index: 4, kind: input, shape index: {}]
  %s5 = inlined_call_operand.hbm [shape: f32[2,16,32], index: 5, kind: input, shape index: {}]
  %s6 = inlined_call_operand.hbm [shape: f32[2,16,32], index: 6, kind: output, shape index: {}]
  %s7 = sld [smem:[#allocation0]]
  $region77: #{tpu_custom_call.1} parent=0
    _
  %s9 = ssub.s32 1, %s7
  %s10 = scalar_select 0, %s9, %s7
  $region1: #{tpu_custom_call.1} parent=0
    #allocation3 [shape = 'u8[8192]{0}', space=vmem, size = 0x2000, scoped, tag = 'input window, operand 0, single buffered']
    #allocation4 [shape = 's32[2]{0}', space=sflag, size = 0x8, scoped, tag = 'scoped memory for tpu_custom_call.1']
    #allocation5 [shape = 's32[2]{0}', space=sflag, size = 0x8, scoped, tag = 'scoped memory for tpu_custom_call.1']
    #allocation6 [shape = 'u8[512]{0}', space=vmem, size = 0x400, scoped, tag = 'input window, operand 1, single buffered']
    #allocation7 [shape = 's32[1]{0}', space=sflag, size = 0x4, scoped, tag = 'scoped memory for tpu_custom_call.1']
    #allocation8 [shape = 'u8[8192]{0}', space=vmem, size = 0x2000, scoped, tag = 'input window, operand 4, single buffered']
    #allocation9 [shape = 'u8[16384]{0}', space=vmem, size = 0x4000, scoped, tag = 'input window, operand 5']
    #allocation10 [shape = 's32[2]{0}', space=sflag, size = 0x8, scoped, tag = 'scoped memory for tpu_custom_call.1']
    #allocation11 [shape = 'u8[16384]{0}', space=vmem, size = 0x4000, scoped, tag = 'output window, operand 0']
    %11 = vsyncpa [#allocation4], 0
    %12 = vsyncpa [#allocation7], 0
    %13 = vsyncpa [#allocation10], 0
    %s14 = scalar_lea.sflag [#allocation10], 1
    %15 = vsyncpa %s14, 0
    %16 = vsyncpa [#allocation5], 0
    %s17 = scalar_lea.sflag [#allocation5], 1
    %18 = vsyncpa %s17, 0
    loop: start=0, step=1, limit=4
    $region2: #{tpu_custom_call.1} parent=1 // loop_pre_header
      _
    $region3: #{tpu_custom_call.1} parent=1 // loop_header
      %s20 = sphi 0, %s24
      %p21 = scmp.ge.s32.totalorder %s20, 4
      %s27 = sphi 0, %s39
      %s28 = sphi 0, %s35
      %s29 = sphi 0, %s27
      %s30 = sphi 0, %s28
      %s31 = sphi 0, %s29
      %s32 = sphi 0, %s30
      %s42 = sphi 0, %s44
      %s45 = sphi 0, %s42
      %s46 = sphi 0, %s45
      %s62 = sphi 0, %s46
      %s66 = sphi 0, %s66
      %s68 = sphi 0, %s66
      %s69 = sphi 0, %s68
      %s83 = sphi 0, %s69
      %s87 = sphi 0, %s87
      %s89 = sphi 0, %s87
      %s90 = sphi 0, %s89
      %s104 = sphi 0, %s90
      %s108 = sphi 0, %s108
      %s110 = sphi 0, %s108
      %s111 = sphi 0, %s110
      %s125 = sphi 0, %s111
      %s129 = sphi 0, %s129
      %s131 = sphi 0, %s129
      %s132 = sphi 0, %s131
      %s146 = sphi 0, %s132
      %s154 = sphi 0, %s156
      %s157 = sphi 0, %s154
      %s158 = sphi 0, %s157
      %s174 = sphi 0, %s158
      %s182 = sphi 0, %s184
      %s185 = sphi 0, %s182
      %s186 = sphi 0, %s185
      %s202 = sphi 0, %s186
    $region4: #{tpu_custom_call.1} parent=1 // loop_header_branch
      %23 = sbr.rel (%p21) target = $region8
    $region5: #{tpu_custom_call.1} parent=1 // loop_body
      %s25 = ssub.s32 %s20, 1
      %s26 = ssub.s32 %s20, 2
      %s33 = sadd.s32 1, %s28
      %p34 = scmp.ge.s32.totalorder %s33, 2
      %s35 = scalar_select %p34, 0, %s33
      %s36 = sadd.s32 1, %s27
      %s37 = scalar_select %p34, %s36, %s27
      %p38 = scmp.ge.s32.totalorder %s37, 1
      %s39 = scalar_select %p38, 0, %s37
      %s40 = ssub.s32 %s27, %s39
      %p41 = scmp.eq.s32.totalorder %s40, 0
      %s43 = sadd.s32 %s42, 1
      %s44 = scalar_select %p41, %s42, %s43
      %p47 = pneg %p41
      %p48 = scmp.eq.s32.totalorder %s20, 1
      %p49 = por %p47, %p48
      %p50 = scmp.ne.s32.totalorder %s42, %s45
      %p51 = scmp.eq.s32.totalorder %s20, 0
      %p52 = por %p50, %p51
      %p53 = scmp.ne.s32.totalorder %s42, %s45
      %p54 = scmp.eq.s32.totalorder %s25, 1
      %p55 = por %p53, %p54
      %p56 = scmp.ne.s32.totalorder %s45, %s46
      %p57 = scmp.eq.s32.totalorder %s25, 0
      %p58 = por %p56, %p57
      %p59 = scmp.ne.s32.totalorder %s45, %s46
      %p60 = scmp.eq.s32.totalorder %s26, 1
      %p61 = por %p59, %p60
      %p63 = scmp.ne.s32.totalorder %s46, %s62
      %p64 = scmp.eq.s32.totalorder %s26, 0
      %p65 = por %p63, %p64
      %s67 = sadd.s32 %s66, 1
      %p70 = scmp.eq.s32.totalorder %s20, 1
      %p71 = scmp.ne.s32.totalorder %s66, %s68
      %p72 = scmp.eq.s32.totalorder %s20, 0
      %p73 = por %p71, %p72
      %p74 = scmp.ne.s32.totalorder %s66, %s68
      %p75 = scmp.eq.s32.totalorder %s25, 1
      %p76 = por %p74, %p75
      %p77 = scmp.ne.s32.totalorder %s68, %s69
      %p78 = scmp.eq.s32.totalorder %s25, 0
      %p79 = por %p77, %p78
      %p80 = scmp.ne.s32.totalorder %s68, %s69
      %p81 = scmp.eq.s32.totalorder %s26, 1
      %p82 = por %p80, %p81
      %p84 = scmp.ne.s32.totalorder %s69, %s83
      %p85 = scmp.eq.s32.totalorder %s26, 0
      %p86 = por %p84, %p85
      %s88 = sadd.s32 %s87, 1
      %p91 = scmp.eq.s32.totalorder %s20, 1
      %p92 = scmp.ne.s32.totalorder %s87, %s89
      %p93 = scmp.eq.s32.totalorder %s20, 0
      %p94 = por %p92, %p93
      %p95 = scmp.ne.s32.totalorder %s87, %s89
      %p96 = scmp.eq.s32.totalorder %s25, 1
      %p97 = por %p95, %p96
      %p98 = scmp.ne.s32.totalorder %s89, %s90
      %p99 = scmp.eq.s32.totalorder %s25, 0
      %p100 = por %p98, %p99
      %p101 = scmp.ne.s32.totalorder %s89, %s90
      %p102 = scmp.eq.s32.totalorder %s26, 1
      %p103 = por %p101, %p102
      %p105 = scmp.ne.s32.totalorder %s90, %s104
      %p106 = scmp.eq.s32.totalorder %s26, 0
      %p107 = por %p105, %p106
      %s109 = sadd.s32 %s108, 1
      %p112 = scmp.eq.s32.totalorder %s20, 1
      %p113 = scmp.ne.s32.totalorder %s108, %s110
      %p114 = scmp.eq.s32.totalorder %s20, 0
      %p115 = por %p113, %p114
      %p116 = scmp.ne.s32.totalorder %s108, %s110
      %p117 = scmp.eq.s32.totalorder %s25, 1
      %p118 = por %p116, %p117
      %p119 = scmp.ne.s32.totalorder %s110, %s111
      %p120 = scmp.eq.s32.totalorder %s25, 0
      %p121 = por %p119, %p120
      %p122 = scmp.ne.s32.totalorder %s110, %s111
      %p123 = scmp.eq.s32.totalorder %s26, 1
      %p124 = por %p122, %p123
      %p126 = scmp.ne.s32.totalorder %s111, %s125
      %p127 = scmp.eq.s32.totalorder %s26, 0
      %p128 = por %p126, %p127
      %s130 = sadd.s32 %s129, 1
      %p133 = scmp.eq.s32.totalorder %s20, 1
      %p134 = scmp.ne.s32.totalorder %s129, %s131
      %p135 = scmp.eq.s32.totalorder %s20, 0
      %p136 = por %p134, %p135
      %p137 = scmp.ne.s32.totalorder %s129, %s131
      %p138 = scmp.eq.s32.totalorder %s25, 1
      %p139 = por %p137, %p138
      %p140 = scmp.ne.s32.totalorder %s131, %s132
      %p141 = scmp.eq.s32.totalorder %s25, 0
      %p142 = por %p140, %p141
      %p143 = scmp.ne.s32.totalorder %s131, %s132
      %p144 = scmp.eq.s32.totalorder %s26, 1
      %p145 = por %p143, %p144
      %p147 = scmp.ne.s32.totalorder %s132, %s146
      %p148 = scmp.eq.s32.totalorder %s26, 0
      %p149 = por %p147, %p148
      %s150 = ssub.s32 %s28, %s35
      %s151 = ssub.s32 %s27, %s39
      %s152 = sor.u32 %s150, %s151
      %p153 = scmp.eq.s32.totalorder %s152, 0
      %s155 = sadd.s32 %s154, 1
      %s156 = scalar_select %p153, %s154, %s155
      %p159 = pneg %p153
      %p160 = scmp.eq.s32.totalorder %s20, 1
      %p161 = por %p159, %p160
      %p162 = scmp.ne.s32.totalorder %s154, %s157
      %p163 = scmp.eq.s32.totalorder %s20, 0
      %p164 = por %p162, %p163
      %p165 = scmp.ne.s32.totalorder %s154, %s157
      %p166 = scmp.eq.s32.totalorder %s25, 1
      %p167 = por %p165, %p166
      %p168 = scmp.ne.s32.totalorder %s157, %s158
      %p169 = scmp.eq.s32.totalorder %s25, 0
      %p170 = por %p168, %p169
      %p171 = scmp.ne.s32.totalorder %s157, %s158
      %p172 = scmp.eq.s32.totalorder %s26, 1
      %p173 = por %p171, %p172
      %p175 = scmp.ne.s32.totalorder %s158, %s174
      %p176 = scmp.eq.s32.totalorder %s26, 0
      %p177 = por %p175, %p176
      %s178 = ssub.s32 %s28, %s35
      %s179 = ssub.s32 %s27, %s39
      %s180 = sor.u32 %s178, %s179
      %p181 = scmp.eq.s32.totalorder %s180, 0
      %s183 = sadd.s32 %s182, 1
      %s184 = scalar_select %p181, %s182, %s183
      %p187 = pneg %p181
      %p188 = scmp.eq.s32.totalorder %s20, 1
      %p189 = por %p187, %p188
      %p190 = scmp.ne.s32.totalorder %s182, %s185
      %p191 = scmp.eq.s32.totalorder %s20, 0
      %p192 = por %p190, %p191
      %p193 = scmp.ne.s32.totalorder %s182, %s185
      %p194 = scmp.eq.s32.totalorder %s25, 1
      %p195 = por %p193, %p194
      %p196 = scmp.ne.s32.totalorder %s185, %s186
      %p197 = scmp.eq.s32.totalorder %s25, 0
      %p198 = por %p196, %p197
      %p199 = scmp.ne.s32.totalorder %s185, %s186
      %p200 = scmp.eq.s32.totalorder %s26, 1
      %p201 = por %p199, %p200
      %p203 = scmp.ne.s32.totalorder %s186, %s202
      %p204 = scmp.eq.s32.totalorder %s26, 0
      %p205 = por %p203, %p204
      %p206 = scmp.le.s32.totalorder 1, %s20
      %p207 = scmp.lt.s32.totalorder %s20, 3
      %p208 = pnand %p206, %p207
      %p209 = pneg %p208
      // Predicated region
      $region9: #{tpu_custom_call.1} parent=5 // pred_check
        _
      $region10: #{tpu_custom_call.1} parent=5 // pred_check_branch
        %211 = sbr.rel (%p208) target = $region12
      $region11: #{tpu_custom_call.1} parent=5 // pred_region
        %s212 = ssub.s32 %s20, 1
        // Predicated region
        $region13: #{tpu_custom_call.1} parent=11 // pred_check
          %p213 = pneg %p58
        $region14: #{tpu_custom_call.1} parent=11 // pred_check_branch
          %215 = sbr.rel (%p213) target = $region16
        $region15: #{tpu_custom_call.1} parent=11 // pred_region
          %s216 = smul.u32 2, %s29
          %218 = vsyncadd [#allocation4], 0
          %s219 = smul.addr %s216, 8
          %s220 = scalar_lea.hbm %s0, %s219
          %s221 = sshll.u32 %s220, 4
          %s222 = int_to_ptr.hbm [resolvable:$true] %s221
          %s223 = sshll.u32 [#allocation3], 4
          %s224 = int_to_ptr.vmem [resolvable:$true] %s223
          %229 = dma.hbm_to_vmem [thread:$0]  %s222, 256, %s224, [#allocation4], 128, 128, 8
        $region16: #{tpu_custom_call.1} parent=11 // pred_fallthru
          _
        // Predicated region
        $region17: #{tpu_custom_call.1} parent=11 // pred_check
          %p230 = pneg %p79
        $region18: #{tpu_custom_call.1} parent=11 // pred_check_branch
          %232 = sbr.rel (%p230) target = $region20
        $region19: #{tpu_custom_call.1} parent=11 // pred_region
          %234 = vsyncadd [#allocation7], 0
          %s236 = sshll.u32 %s1, 4
          %s237 = int_to_ptr.hbm [resolvable:$true] %s236
          %s238 = sshll.u32 [#allocation6], 4
          %s239 = int_to_ptr.vmem [resolvable:$true] %s238
          %241 = dma.hbm_to_vmem [thread:$0]  %s237, 16, %s239, [#allocation7]
        $region20: #{tpu_custom_call.1} parent=11 // pred_fallthru
          _
        // Predicated region
        $region21: #{tpu_custom_call.1} parent=11 // pred_check
          %p242 = pneg %p100
        $region22: #{tpu_custom_call.1} parent=11 // pred_check_branch
          %244 = sbr.rel (%p242) target = $region24
        $region23: #{tpu_custom_call.1} parent=11 // pred_region
          _
        $region24: #{tpu_custom_call.1} parent=11 // pred_fallthru
          _
        // Predicated region
        $region25: #{tpu_custom_call.1} parent=11 // pred_check
          %p245 = pneg %p121
        $region26: #{tpu_custom_call.1} parent=11 // pred_check_branch
          %247 = sbr.rel (%p245) target = $region28
        $region27: #{tpu_custom_call.1} parent=11 // pred_region
          _
        $region28: #{tpu_custom_call.1} parent=11 // pred_fallthru
          _
        // Predicated region
        $region29: #{tpu_custom_call.1} parent=11 // pred_check
          %p248 = pneg %p142
        $region30: #{tpu_custom_call.1} parent=11 // pred_check_branch
          %250 = sbr.rel (%p248) target = $region32
        $region31: #{tpu_custom_call.1} parent=11 // pred_region
          %252 = vsyncadd [#allocation7], 0
          %s253 = sshll.u32 %s4, 4
          %s254 = int_to_ptr.hbm [resolvable:$true] %s253
          %s255 = sshll.u32 [#allocation8], 4
          %s256 = int_to_ptr.vmem [resolvable:$true] %s255
          %261 = dma.hbm_to_vmem [thread:$0]  %s254, 256, %s256, [#allocation7], 128, 128, 8
        $region32: #{tpu_custom_call.1} parent=11 // pred_fallthru
          _
      $region12: #{tpu_custom_call.1} parent=5 // pred_fallthru
        _
      %p262 = scmp.lt.s32.totalorder %s20, 2
      // Predicated region
      $region33: #{tpu_custom_call.1} parent=5 // pred_check
        %p263 = pneg %p262
      $region34: #{tpu_custom_call.1} parent=5 // pred_check_branch
        %265 = sbr.rel (%p263) target = $region36
      $region35: #{tpu_custom_call.1} parent=5 // pred_region
        // Predicated region
        $region37: #{tpu_custom_call.1} parent=35 // pred_check
          %p266 = pneg %p164
        $region38: #{tpu_custom_call.1} parent=35 // pred_check_branch
          %268 = sbr.rel (%p266) target = $region40
        $region39: #{tpu_custom_call.1} parent=35 // pred_region
          %s269 = sand.u32 %s154, 1
          %s270 = scalar_lea.sflag [#allocation10], %s269
          %s271 = sand.u32 %s154, 1
          %s272 = smul.addr %s271, 16
          %s273 = scalar_lea.vmem [#allocation9], %s272
          %s274 = smul.u32 2, %s27
          %276 = vsyncadd %s270, 0
          %s277 = smul.addr %s28, 2
          %s278 = sadd.s32 %s274, %s277
          %s279 = smul.addr %s278, 8
          %s280 = scalar_lea.hbm %s5, %s279
          %s281 = sshll.u32 %s280, 4
          %s282 = int_to_ptr.hbm [resolvable:$true] %s281
          %s283 = sshll.u32 %s273, 4
          %s284 = int_to_ptr.vmem [resolvable:$true] %s283
          %289 = dma.hbm_to_vmem [thread:$0]  %s282, 256, %s284, %s270, 128, 128, 8
        $region40: #{tpu_custom_call.1} parent=35 // pred_fallthru
          _
      $region36: #{tpu_custom_call.1} parent=5 // pred_fallthru
        _
      %p290 = scmp.le.s32.totalorder 1, %s20
      %p291 = scmp.lt.s32.totalorder %s20, 3
      %p292 = pnand %p290, %p291
      %p293 = pneg %p292
      // Predicated region
      $region41: #{tpu_custom_call.1} parent=5 // pred_check
        _
      $region42: #{tpu_custom_call.1} parent=5 // pred_check_branch
        %295 = sbr.rel (%p292) target = $region44
      $region43: #{tpu_custom_call.1} parent=5 // pred_region
        %s296 = ssub.s32 %s20, 1
        // Predicated region
        $region45: #{tpu_custom_call.1} parent=43 // pred_check
          %p297 = pneg %p58
        $region46: #{tpu_custom_call.1} parent=43 // pred_check_branch
          %299 = sbr.rel (%p297) target = $region48
        $region47: #{tpu_custom_call.1} parent=43 // pred_region
          %301 = dma.done [#allocation4], 256
        $region48: #{tpu_custom_call.1} parent=43 // pred_fallthru
          _
        // Predicated region
        $region49: #{tpu_custom_call.1} parent=43 // pred_check
          %p302 = pneg %p79
        $region50: #{tpu_custom_call.1} parent=43 // pred_check_branch
          %304 = sbr.rel (%p302) target = $region52
        $region51: #{tpu_custom_call.1} parent=43 // pred_region
          %306 = dma.done [#allocation7], 16
        $region52: #{tpu_custom_call.1} parent=43 // pred_fallthru
          _
        // Predicated region
        $region53: #{tpu_custom_call.1} parent=43 // pred_check
          %p307 = pneg %p142
        $region54: #{tpu_custom_call.1} parent=43 // pred_check_branch
          %309 = sbr.rel (%p307) target = $region56
        $region55: #{tpu_custom_call.1} parent=43 // pred_region
          %311 = dma.done [#allocation7], 256
        $region56: #{tpu_custom_call.1} parent=43 // pred_fallthru
          _
        %s312 = sand.u32 %s157, 1
        %s313 = scalar_lea.sflag [#allocation10], %s312
        %s314 = sand.u32 %s157, 1
        %s315 = smul.addr %s314, 16
        %s316 = scalar_lea.vmem [#allocation9], %s315
        // Predicated region
        $region57: #{tpu_custom_call.1} parent=43 // pred_check
          %p317 = pneg %p170
        $region58: #{tpu_custom_call.1} parent=43 // pred_check_branch
          %319 = sbr.rel (%p317) target = $region60
        $region59: #{tpu_custom_call.1} parent=43 // pred_region
          %321 = dma.done %s313, 256
        $region60: #{tpu_custom_call.1} parent=43 // pred_fallthru
          _
        %p322 = pneg %p58
        %p323 = pneg %p55
        %p324 = pneg %p79
        %p325 = pneg %p76
        %p326 = pneg %p100
        %p327 = pneg %p97
        %p328 = pneg %p121
        %p329 = pneg %p118
        %p330 = pneg %p142
        %p331 = pneg %p139
        %s332 = sand.u32 %s157, 1
        %s333 = scalar_lea.sflag [#allocation10], %s332
        %s334 = sand.u32 %s157, 1
        %s335 = smul.addr %s334, 16
        %s336 = scalar_lea.vmem [#allocation9], %s335
        %p337 = pneg %p170
        %p338 = pneg %p167
        %p339 = pneg %p198
        %p340 = pneg %p195
        %s341 = sand.u32 %s185, 1
        %s342 = scalar_lea.sflag [#allocation5], %s341
        %s343 = sand.u32 %s185, 1
        %s344 = smul.addr %s343, 16
        %s345 = scalar_lea.vmem [#allocation11], %s344
        %s346 = smul.u32 2, %s29
        %s347 = smul.u32 2, %s29
        %s348 = smul.u32 2, %s29
        %p349 = scmp.eq.s32.totalorder %s30, 0
        // Predicated region
        $region61: #{tpu_custom_call.1} parent=43 // pred_check
          %p350 = pneg %p349
        $region62: #{tpu_custom_call.1} parent=43 // pred_check_branch
          %352 = sbr.rel (%p350) target = $region64
        $region63: #{tpu_custom_call.1} parent=43 // pred_region
          %v353 = vld [vmem:[#allocation3] sm:$0xff]
          %v354 = vld [vmem:[#allocation3 + $0x8] sm:$0xff]
          %v355 = vld [vmem:[#allocation6] sm:$0x1]
          %v357 = vperm.slane %v355, 0
          %v359 = vsub.f32 %v353, %v357
          %v360 = vsub.f32 %v354, %v357
          %v361 = vld [vmem:[%s2] sm:$0x1]
          %v362 = vmul.f32 %v359, %v359
          %v363 = vmul.f32 %v360, %v360
          %v365 = vperm.slane %v361, 0
          %v367 = vmul.f32 %v365, %v362
          %v368 = vmul.f32 %v365, %v363
          %v369 = vld [vmem:[%s3] sm:$0x1]
          %v371 = vperm.slane %v369, 0
          %v373 = vadd.f32 %v367, %v371
          %v374 = vadd.f32 %v368, %v371
          %vm375 = vcmask 80896
          %v376 = vsel %vm375, %v373, -inf
          %377 = vmax.xlane.f32.xlu0 %v376
          %v378 = vpop.xlane.xlu0 %377
          %v379 = vsel %vm375, %v374, -inf
          %380 = vmax.xlane.f32.xlu0 %v379
          %v381 = vpop.xlane.xlu0 %380
          %v382 = vsub.f32 %v373, %v378
          %v383 = vsub.f32 %v374, %v381
          %v384 = vmul.f32 %v382, 1.442695
          %v385 = vpow.pop %v384
          %v386 = vmul.f32 %v383, 1.442695
          %v387 = vpow.pop %v386
          %v388 = vsel %vm375, %v385, 0.0
          %389 = vadd.xlane.f32.xlu0 %v388
          %v390 = vpop.xlane.xlu0 %389
          %v391 = vsel %vm375, %v387, 0.0
          %392 = vadd.xlane.f32.xlu0 %v391
          %v393 = vpop.xlane.xlu0 %392
          %v394 = vrcp.pop %v390
          %v395 = vrcp.pop %v393
          %v396 = vmul.f32 %v385, %v394
          %v397 = vmul.f32 %v387, %v395
          %v398 = vld [vmem:[#allocation8] sm:$0xff]
          %v399 = vld [vmem:[#allocation8 + $0x8] sm:$0x3]
          %v401 = vsel %vm375, %v396, 0
          %v404 = vsel %vm375, %v397, 0
          %vm406 = vcmask 1041408
          %v408 = vsel %vm406, %v399, 0
          %410 = vmatpush.msra.mxu0 0.0
          %411 = vmatpush.msra.mxu0 0.0
          %412 = vmatpush.msra.mxu0 0.0
          %413 = vmatpush.msra.mxu0 0.0
          %414 = vmatpush.msra.mxu0 0.0
          %415 = vmatpush.msra.mxu0 0.0
          %416 = vmatpush.msra.mxu0 0.0
          %417 = vmatpush.msra.mxu0 0.0
          %418 = vmatpush.msra.mxu0 0.0
          %419 = vmatpush.msra.mxu0 0.0
          %420 = vmatpush.msra.mxu0 0.0
          %421 = vmatpush.msra.mxu0 0.0
          %422 = vmatpush.msra.mxu0 0.0
          %423 = vmatpush.msra.mxu0 0.0
          %424 = vmatpush.msra.mxu0 %v408
          %425 = vmatpush.msra.mxu0 %v398
          %426 = vmatmul.f32.gmra.mxu0 %v401
          %v427 = vpop.f32.mrf.mxu0
          %v428 = vadd.f32 0.0, %v427
          %429 = vmatmul.f32.gmra.mxu0 %v404
          %v430 = vpop.f32.mrf.mxu0
          %v431 = vadd.f32 0.0, %v430
          %432 = vdwg.mxu0
          %vm433 = vcmask 261120
          %434 = vst.msk [vmem:[#allocation2] sm:$0xff] %vm433, %v428
          %435 = vst.msk [vmem:[#allocation2 + $0x8] sm:$0xff] %vm433, %v431
        $region64: #{tpu_custom_call.1} parent=43 // pred_fallthru
          _
        %v436 = vld [vmem:[%s316] sm:$0xff]
        %v437 = vld [vmem:[%s316 + $0x8] sm:$0xff]
        %v438 = vld [vmem:[#allocation2] sm:$0xff]
        %v439 = vld [vmem:[#allocation2 + $0x8] sm:$0xff]
        %v440 = vadd.f32 %v436, %v438
        %v441 = vadd.f32 %v437, %v439
        %vm442 = vcmask 261120
        %443 = vst.msk [vmem:[%s345] sm:$0xff] %vm442, %v440
        %444 = vst.msk [vmem:[%s345 + $0x8] sm:$0xff] %vm442, %v441
        %s445 = sand.u32 %s185, 1
        %s446 = scalar_lea.sflag [#allocation5], %s445
        %s447 = sand.u32 %s185, 1
        %s448 = smul.addr %s447, 16
        %s449 = scalar_lea.vmem [#allocation11], %s448
        // Predicated region
        $region65: #{tpu_custom_call.1} parent=43 // pred_check
          %p450 = pneg %p195
        $region66: #{tpu_custom_call.1} parent=43 // pred_check_branch
          %452 = sbr.rel (%p450) target = $region68
        $region67: #{tpu_custom_call.1} parent=43 // pred_region
          %s453 = smul.u32 2, %s29
          %455 = vsyncadd %s446, 0
          %s456 = smul.addr %s30, 2
          %s457 = sadd.s32 %s453, %s456
          %s458 = smul.addr %s457, 8
          %s459 = scalar_lea.hbm %s6, %s458
          %s460 = sshll.u32 %s449, 4
          %s461 = int_to_ptr.vmem [resolvable:$true] %s460
          %s462 = sshll.u32 %s459, 4
          %s463 = int_to_ptr.hbm [resolvable:$true] %s462
          %468 = dma.vmem_to_hbm [thread:$0]  %s461, 256, %s463, %s446, 128, 128, 8
        $region68: #{tpu_custom_call.1} parent=43 // pred_fallthru
          _
      $region44: #{tpu_custom_call.1} parent=5 // pred_fallthru
        _
      %p469 = scmp.le.s32.totalorder 2, %s20
      // Predicated region
      $region69: #{tpu_custom_call.1} parent=5 // pred_check
        %p470 = pneg %p469
      $region70: #{tpu_custom_call.1} parent=5 // pred_check_branch
        %472 = sbr.rel (%p470) target = $region72
      $region71: #{tpu_custom_call.1} parent=5 // pred_region
        %s473 = ssub.s32 %s20, 2
        // Predicated region
        $region73: #{tpu_custom_call.1} parent=71 // pred_check
          %p474 = pneg %p201
        $region74: #{tpu_custom_call.1} parent=71 // pred_check_branch
          %476 = sbr.rel (%p474) target = $region76
        $region75: #{tpu_custom_call.1} parent=71 // pred_region
          %s477 = sand.u32 %s186, 1
          %s478 = scalar_lea.sflag [#allocation5], %s477
          %s479 = sand.u32 %s186, 1
          %s480 = smul.addr %s479, 16
          %s481 = scalar_lea.vmem [#allocation11], %s480
          %483 = dma.done %s478, 256
        $region76: #{tpu_custom_call.1} parent=71 // pred_fallthru
          _
      $region72: #{tpu_custom_call.1} parent=5 // pred_fallthru
        _
    $region6: #{tpu_custom_call.1} parent=1 // loop_footer
      %s24 = sadd.s32 1, %s20
    $region7: #{tpu_custom_call.1} parent=1 // loop_footer_branch
      %19 = sbr.rel target = $region3
    $region8: #{tpu_custom_call.1} parent=1 // loop_exit
      _
    %484 = vsyncpa [#allocation4], 1
    %s485 = scalar_lea.sflag [#allocation4], 1
    %486 = vsyncpa %s485, 1
    %487 = vsyncpa [#allocation7], 1
    %488 = vsyncpa [#allocation10], 1
    %s489 = scalar_lea.sflag [#allocation10], 1
    %490 = vsyncpa %s489, 1
    %491 = vsyncpa [#allocation5], 1
    %s492 = scalar_lea.sflag [#allocation5], 1
    %493 = vsyncpa %s492, 1

</llo_original>
